<compile_context>
chip_gen: v7x
topology: tpu7x:2x2x1
jax: 0.10.0
libtpu: 0.0.40
codegen_flags: <defaults>
</compile_context>

<pallas_src>
import functools

import jax
import jax.numpy as jnp
from jax.experimental import pallas as pl
from jax.experimental.pallas import tpu as pltpu


def _round_up(x, m):
    return ((x + m - 1) // m) * m


def _choose_block_b(b_sz, requested):
    """Largest multiple-of-8 divisor of b_sz that is <= requested and gives
    >= 2 grid steps; fall back to the full batch (single step) otherwise."""
    cap = min(requested, b_sz // 2)
    best = None
    t = 8
    while t <= cap:
        if b_sz % t == 0:
            best = t
        t += 8
    return best if best is not None else b_sz


def make_generator_kernel(n_mlp_layers, evv_pad):
    """Kernel body for a given (static) number of MLP layers."""

    def kernel(*refs):
        # refs layout:
        #   x, (W_i, b_i) * n_mlp_layers, W_head, b_head, out_edges, out_nodes
        x_ref = refs[0]
        idx = 1
        h = x_ref[...]
        for _ in range(n_mlp_layers):
            w = refs[idx][...]
            b = refs[idx + 1][...]
            idx += 2
            h = jnp.tanh(
                jnp.dot(h.astype(w.dtype), w, preferred_element_type=jnp.float32)
                + b.astype(jnp.float32)
            )

        w_head = refs[idx][...]
        b_head = refs[idx + 1][...]
        out_e_ref = refs[idx + 2]
        out_n_ref = refs[idx + 3]

        # One fused, lane-dense head matmul; split into the two outputs at a
        # 128-lane boundary (both stores are unmasked, lane-dense).
        fused = (
            jnp.dot(h.astype(w_head.dtype), w_head,
                    preferred_element_type=jnp.float32)
            + b_head.astype(jnp.float32)
        )
        out_e_ref[...] = fused[:, :evv_pad].astype(out_e_ref.dtype)
        out_n_ref[...] = fused[:, evv_pad:].astype(out_n_ref.dtype)

    return kernel


def init_generator_params(key, z_dim, conv_dims, vertex, nodes, edges):
    """Deterministic PyTorch-Linear-style init (uniform +/- 1/sqrt(fan_in))."""

    def linear(key, fan_in, fan_out):
        kw, kb = jax.random.split(key)
        bound = 1.0 / jnp.sqrt(jnp.float32(fan_in))
        w = jax.random.uniform(kw, (fan_in, fan_out), jnp.float32, -bound, bound)
        b = jax.random.uniform(kb, (1, fan_out), jnp.float32, -bound, bound)
        return w, b

    keys = jax.random.split(key, len(conv_dims) + 2)
    mlp = []
    d_in = z_dim
    for i, d_out in enumerate(conv_dims):
        mlp.append(linear(keys[i], d_in, d_out))
        d_in = d_out

    h = conv_dims[-1]
    w_e, b_e = linear(keys[len(conv_dims)], h, edges * vertex * vertex)
    w_n, b_n = linear(keys[len(conv_dims) + 1], h, vertex * nodes)
    return {"mlp": mlp, "edges": (w_e, b_e), "nodes": (w_n, b_n)}


def prepare_generator_params(params, *, vertex, nodes, edges,
                             param_dtype=jnp.float32):
    """One-time parameter glue (outside the jitted forward).

      * Every MLP layer's output width (and subsequent input width) is
        zero-padded to a multiple of 128 -> all intermediate activations are
        lane-dense [block_b, 128k].  Padded lanes stay exactly 0 (tanh(0)=0)
        and meet zero weight rows, so the math is unchanged.
      * The head weight is one fused matrix whose columns are
        [ symmetrized edge weights in (i, j, e) output order, padded to x128 |
          node weights, padded to x128 ].
      * Optionally casts all weights to bf16 (f32 accumulation in the kernel).
    """
    evv = edges * vertex * vertex
    vn = vertex * nodes
    evv_pad = _round_up(evv, 128)
    vn_pad = _round_up(vn, 128)

    mlp_prepared = []
    for li, (w, b) in enumerate(params["mlp"]):
        d_in, d_out = w.shape
        d_in_pad = d_in if li == 0 else _round_up(d_in, 128)  # x stays z_dim-wide
        d_out_pad = _round_up(d_out, 128)
        w_p = jnp.zeros((d_in_pad, d_out_pad), jnp.float32).at[:d_in, :d_out].set(w)
        b_p = jnp.zeros((1, d_out_pad), jnp.float32).at[:, :d_out].set(b)
        mlp_prepared.append((w_p.astype(param_dtype), b_p.astype(param_dtype)))

    w_e, b_e = params["edges"]
    w_n, b_n = params["nodes"]
    hidden = w_e.shape[0]
    hidden_pad = _round_up(hidden, 128)

    # Symmetrize over (i, j) and reorder columns to (i, j, e).
    w_e4 = w_e.reshape(hidden, edges, vertex, vertex)
    w_sym = 0.5 * (w_e4 + w_e4.transpose(0, 1, 3, 2))
    w_sym = w_sym.transpose(0, 2, 3, 1).reshape(hidden, evv)
    b_e4 = b_e.reshape(1, edges, vertex, vertex)
    b_sym = 0.5 * (b_e4 + b_e4.transpose(0, 1, 3, 2))
    b_sym = b_sym.transpose(0, 2, 3, 1).reshape(1, evv)

    w_head = jnp.zeros((hidden_pad, evv_pad + vn_pad), jnp.float32)
    w_head = w_head.at[:hidden, :evv].set(w_sym)
    w_head = w_head.at[:hidden, evv_pad:evv_pad + vn].set(w_n)
    b_head = jnp.zeros((1, evv_pad + vn_pad), jnp.float32)
    b_head = b_head.at[:, :evv].set(b_sym)
    b_head = b_head.at[:, evv_pad:evv_pad + vn].set(b_n)

    return {
        "mlp": mlp_prepared,
        "head": (w_head.astype(param_dtype), b_head.astype(param_dtype)),
    }


@functools.partial(jax.jit, static_argnames=("vertex", "nodes", "edges", "block_b"))
def generator_forward(x, prepared, *, vertex, nodes, edges, block_b=512):
    b_sz, z_dim = x.shape
    bb = _choose_block_b(b_sz, block_b)

    mlp = prepared["mlp"]
    w_head, b_head = prepared["head"]
    evv = edges * vertex * vertex
    vn = vertex * nodes
    evv_pad = _round_up(evv, 128)
    vn_pad = _round_up(vn, 128)
    assert w_head.shape[1] == evv_pad + vn_pad

    kernel = make_generator_kernel(len(mlp), evv_pad)

    args = [x]
    in_specs = [pl.BlockSpec((bb, z_dim), lambda i: (i, 0))]
    for w, b in list(mlp) + [(w_head, b_head)]:
        args += [w, b]
        in_specs += [
            pl.BlockSpec(w.shape, lambda i: (0, 0)),   # grid-invariant: no re-DMA
            pl.BlockSpec(b.shape, lambda i: (0, 0)),
        ]

    e_out, n_out = pl.pallas_call(
        kernel,
        grid=(b_sz // bb,),
        in_specs=in_specs,
        out_specs=[
            pl.BlockSpec((bb, evv_pad), lambda i: (i, 0)),
            pl.BlockSpec((bb, vn_pad), lambda i: (i, 0)),
        ],
        out_shape=(
            jax.ShapeDtypeStruct((b_sz, evv_pad), jnp.float32),
            jax.ShapeDtypeStruct((b_sz, vn_pad), jnp.float32),
        ),
        compiler_params=pltpu.CompilerParams(
            dimension_semantics=("parallel",)),
    )(*args)

    # Edge columns are already in (i, j, e) order; if evv is a multiple of 128
    # the reshape is a free metadata op (no copy).  Node slab only drops its
    # small lane padding.
    if evv_pad == evv:
        edges_logits = e_out.reshape(b_sz, vertex, vertex, edges)
    else:
        edges_logits = e_out[:, :evv].reshape(b_sz, vertex, vertex, edges)
    nodes_logits = n_out[:, :vn].reshape(b_sz, vertex, nodes)
    # Dropout: eval-mode identity (see TODO at top).
    return edges_logits, nodes_logits


def reference_forward(x, params, *, vertex, nodes, edges):
    """Plain-JAX reference reproducing the PyTorch forward (eval mode)."""
    h = x
    for w, b in params["mlp"]:
        h = jnp.tanh(h @ w + b)
    w_e, b_e = params["edges"]
    w_n, b_n = params["nodes"]
    e = (h @ w_e + b_e).reshape(-1, edges, vertex, vertex)
    e = (e + e.transpose(0, 1, 3, 2)) / 2.0
    e = e.transpose(0, 2, 3, 1)
    n = (h @ w_n + b_n).reshape(-1, vertex, nodes)
    return e, n


if __name__ == "__main__":
    # Small, module-consistent shapes.  B=16 with the auto-chosen tile (8)
    # gives a 2-step grid so pipelining / megacore sharding is exercised.
    B = 16         # batch
    Z_DIM = 16     # latent dim
    CONV_DIMS = (32, 64)
    VERTEX = 8
    EDGES = 4
    NODES = 5

    key = jax.random.PRNGKey(0)
    k_x, k_p = jax.random.split(key)
    x = jax.random.normal(k_x, (B, Z_DIM), jnp.float32)
    params = init_generator_params(k_p, Z_DIM, CONV_DIMS, VERTEX, NODES, EDGES)

    # One-time weight glue (symmetrize + permute + lane-pad + fuse heads).
    # For v6e/v7x production use param_dtype=jnp.bfloat16 (loosen tolerance).
    prepared = prepare_generator_params(
        params, vertex=VERTEX, nodes=NODES, edges=EDGES,
        param_dtype=jnp.float32)

    edges_logits, nodes_logits = generator_forward(
        x, prepared, vertex=VERTEX, nodes=NODES, edges=EDGES
    )
    jax.block_until_ready((edges_logits, nodes_logits))

    # Sanity check against the plain-JAX reference.
    e_ref, n_ref = reference_forward(x, params, vertex=VERTEX, nodes=NODES, edges=EDGES)
    assert edges_logits.shape == (B, VERTEX, VERTEX, EDGES)
    assert nodes_logits.shape == (B, VERTEX, NODES)
    assert jnp.allclose(edges_logits, e_ref, atol=1e-5, rtol=1e-5)
    assert jnp.allclose(nodes_logits, n_ref, atol=1e-5, rtol=1e-5)

    print("KERNEL_OK")
</pallas_src>

<mosaic_0001>
module attributes {stable_mosaic.version = 11 : i64} {
  func.func @kernel(%arg0: i32, %arg1: memref<8x16xf32, #tpu.memory_space<vmem>>, %arg2: memref<16x128xf32, #tpu.memory_space<vmem>>, %arg3: memref<1x128xf32, #tpu.memory_space<vmem>>, %arg4: memref<128x128xf32, #tpu.memory_space<vmem>>, %arg5: memref<1x128xf32, #tpu.memory_space<vmem>>, %arg6: memref<128x384xf32, #tpu.memory_space<vmem>>, %arg7: memref<1x384xf32, #tpu.memory_space<vmem>>, %arg8: memref<8x256xf32, #tpu.memory_space<vmem>>, %arg9: memref<8x128xf32, #tpu.memory_space<vmem>>) attributes {dimension_semantics = [#tpu.dimension_semantics<parallel>], iteration_bounds = array<i64: 2>, scalar_prefetch = 0 : i64, scratch_operands = 0 : i64, tpu.core_type = #tpu.core_type<tc>, window_params = [{transform_indices = @transform_0, window_bounds = array<i64: 8, 16>}, {pipeline_mode = #tpu.pipeline_mode<synchronous>, transform_indices = @transform_1, window_bounds = array<i64: 16, 128>}, {pipeline_mode = #tpu.pipeline_mode<synchronous>, transform_indices = @transform_2, window_bounds = array<i64: 1, 128>}, {pipeline_mode = #tpu.pipeline_mode<synchronous>, transform_indices = @transform_3, window_bounds = array<i64: 128, 128>}, {pipeline_mode = #tpu.pipeline_mode<synchronous>, transform_indices = @transform_4, window_bounds = array<i64: 1, 128>}, {pipeline_mode = #tpu.pipeline_mode<synchronous>, transform_indices = @transform_5, window_bounds = array<i64: 128, 384>}, {pipeline_mode = #tpu.pipeline_mode<synchronous>, transform_indices = @transform_6, window_bounds = array<i64: 1, 384>}, {transform_indices = @transform_7, window_bounds = array<i64: 8, 256>}, {transform_indices = @transform_8, window_bounds = array<i64: 8, 128>}]} {
    %c0 = arith.constant 0 : index
    %c0_0 = arith.constant 0 : index
    %0 = vector.load %arg1[%c0, %c0_0] : memref<8x16xf32, #tpu.memory_space<vmem>>, vector<8x16xf32>
    %c0_1 = arith.constant 0 : index
    %c0_2 = arith.constant 0 : index
    %1 = vector.load %arg2[%c0_1, %c0_2] : memref<16x128xf32, #tpu.memory_space<vmem>>, vector<16x128xf32>
    %c0_3 = arith.constant 0 : index
    %c0_4 = arith.constant 0 : index
    %2 = vector.load %arg3[%c0_3, %c0_4] : memref<1x128xf32, #tpu.memory_space<vmem>>, vector<1x128xf32>
    %cst = arith.constant dense<0.000000e+00> : vector<8x128xf32>
    %3 = tpu.matmul %0, %1, %cst {dimension_numbers = #tpu.dot_dimension_numbers<[1], [0], [0], [1], [0, 0, 1, 1], [], []>} : vector<8x16xf32>, vector<16x128xf32>, vector<8x128xf32> -> vector<8x128xf32>
    %4 = vector.broadcast %2 : vector<1x128xf32> to vector<8x128xf32>
    %5 = arith.addf %3, %4 : vector<8x128xf32>
    %6 = math.tanh %5 : vector<8x128xf32>
    %c0_5 = arith.constant 0 : index
    %c0_6 = arith.constant 0 : index
    %7 = vector.load %arg4[%c0_5, %c0_6] : memref<128x128xf32, #tpu.memory_space<vmem>>, vector<128x128xf32>
    %c0_7 = arith.constant 0 : index
    %c0_8 = arith.constant 0 : index
    %8 = vector.load %arg5[%c0_7, %c0_8] : memref<1x128xf32, #tpu.memory_space<vmem>>, vector<1x128xf32>
    %cst_9 = arith.constant dense<0.000000e+00> : vector<8x128xf32>
    %9 = tpu.matmul %6, %7, %cst_9 {dimension_numbers = #tpu.dot_dimension_numbers<[1], [0], [0], [1], [0, 0, 1, 1], [], []>} : vector<8x128xf32>, vector<128x128xf32>, vector<8x128xf32> -> vector<8x128xf32>
    %10 = vector.broadcast %8 : vector<1x128xf32> to vector<8x128xf32>
    %11 = arith.addf %9, %10 : vector<8x128xf32>
    %12 = math.tanh %11 : vector<8x128xf32>
    %c0_10 = arith.constant 0 : index
    %c0_11 = arith.constant 0 : index
    %13 = vector.load %arg6[%c0_10, %c0_11] : memref<128x384xf32, #tpu.memory_space<vmem>>, vector<128x384xf32>
    %c0_12 = arith.constant 0 : index
    %c0_13 = arith.constant 0 : index
    %14 = vector.load %arg7[%c0_12, %c0_13] : memref<1x384xf32, #tpu.memory_space<vmem>>, vector<1x384xf32>
    %cst_14 = arith.constant dense<0.000000e+00> : vector<8x384xf32>
    %15 = tpu.matmul %12, %13, %cst_14 {dimension_numbers = #tpu.dot_dimension_numbers<[1], [0], [0], [1], [0, 0, 1, 1], [], []>} : vector<8x128xf32>, vector<128x384xf32>, vector<8x384xf32> -> vector<8x384xf32>
    %16 = vector.broadcast %14 : vector<1x384xf32> to vector<8x384xf32>
    %17 = arith.addf %15, %16 : vector<8x384xf32>
    %18 = vector.extract_strided_slice %17 {offsets = [0, 0], sizes = [8, 256], strides = [1, 1]} : vector<8x384xf32> to vector<8x256xf32>
    %c0_15 = arith.constant 0 : index
    %c0_16 = arith.constant 0 : index
    %19 = vector.load %arg8[%c0_15, %c0_16] : memref<8x256xf32, #tpu.memory_space<vmem>>, vector<8x256xf32>
    tpu.vector_store %arg8[%c0_15, %c0_16], %18 {strides = array<i32>} : memref<8x256xf32, #tpu.memory_space<vmem>>, vector<8x256xf32>,
    %20 = vector.extract_strided_slice %17 {offsets = [0, 256], sizes = [8, 128], strides = [1, 1]} : vector<8x384xf32> to vector<8x128xf32>
    %c0_17 = arith.constant 0 : index
    %c0_18 = arith.constant 0 : index
    %21 = vector.load %arg9[%c0_17, %c0_18] : memref<8x128xf32, #tpu.memory_space<vmem>>, vector<8x128xf32>
    tpu.vector_store %arg9[%c0_17, %c0_18], %20 {strides = array<i32>} : memref<8x128xf32, #tpu.memory_space<vmem>>, vector<8x128xf32>,
    return
  }
  func.func @transform_0(%arg0: i32) -> (i32, i32) {
    %c0_i32 = arith.constant 0 : i32
    %c0_i32_0 = arith.constant 0 : i32
    return %arg0, %c0_i32 : i32, i32
  }
  func.func @transform_1(%arg0: i32) -> (i32, i32) {
    %c0_i32 = arith.constant 0 : i32
    %c0_i32_0 = arith.constant 0 : i32
    %c0_i32_1 = arith.constant 0 : i32
    return %c0_i32, %c0_i32_0 : i32, i32
  }
  func.func @transform_2(%arg0: i32) -> (i32, i32) {
    %c0_i32 = arith.constant 0 : i32
    %c0_i32_0 = arith.constant 0 : i32
    %c0_i32_1 = arith.constant 0 : i32
    return %c0_i32, %c0_i32_0 : i32, i32
  }
  func.func @transform_3(%arg0: i32) -> (i32, i32) {
    %c0_i32 = arith.constant 0 : i32
    %c0_i32_0 = arith.constant 0 : i32
    %c0_i32_1 = arith.constant 0 : i32
    return %c0_i32, %c0_i32_0 : i32, i32
  }
  func.func @transform_4(%arg0: i32) -> (i32, i32) {
    %c0_i32 = arith.constant 0 : i32
    %c0_i32_0 = arith.constant 0 : i32
    %c0_i32_1 = arith.constant 0 : i32
    return %c0_i32, %c0_i32_0 : i32, i32
  }
  func.func @transform_5(%arg0: i32) -> (i32, i32) {
    %c0_i32 = arith.constant 0 : i32
    %c0_i32_0 = arith.constant 0 : i32
    %c0_i32_1 = arith.constant 0 : i32
    return %c0_i32, %c0_i32_0 : i32, i32
  }
  func.func @transform_6(%arg0: i32) -> (i32, i32) {
    %c0_i32 = arith.constant 0 : i32
    %c0_i32_0 = arith.constant 0 : i32
    %c0_i32_1 = arith.constant 0 : i32
    return %c0_i32, %c0_i32_0 : i32, i32
  }
  func.func @transform_7(%arg0: i32) -> (i32, i32) {
    %c0_i32 = arith.constant 0 : i32
    %c0_i32_0 = arith.constant 0 : i32
    return %arg0, %c0_i32 : i32, i32
  }
  func.func @transform_8(%arg0: i32) -> (i32, i32) {
    %c0_i32 = arith.constant 0 : i32
    %c0_i32_0 = arith.constant 0 : i32
    return %arg0, %c0_i32 : i32, i32
  }
}

</mosaic_0001>

<llo_original>
// kernel: generator_forward.1
$region0: #{generator_forward.1}
  #allocation0 [shape = 'u32[]', space=smem, size = 0x4, offset = 0x4, fixed_abs, tag = 'smem constant byte address 0x4 - core index']
  #allocation1 [shape = 'u32[144,128]{1,0:T(1,128)}', space=vmem, size = 0x12000, scoped, tag = 'internal scratch']
  %s0 = inlined_call_operand.hbm [shape: f32[16,16], index: 0, kind: input, shape index: {}]
  %s1 = inlined_call_operand.hbm [shape: f32[16,128], index: 1, kind: input, shape index: {}]
  %s2 = inlined_call_operand.vmem [shape: f32[1,128], index: 2, kind: input, shape index: {}]
  %s3 = inlined_call_operand.hbm [shape: f32[128,128], index: 3, kind: input, shape index: {}]
  %s4 = inlined_call_operand.vmem [shape: f32[1,128], index: 4, kind: input, shape index: {}]
  %s5 = inlined_call_operand.hbm [shape: f32[128,384], index: 5, kind: input, shape index: {}]
  %s6 = inlined_call_operand.vmem [shape: f32[1,384], index: 6, kind: input, shape index: {}]
  %s7 = inlined_call_operand.vmem [shape: f32[16,256], index: 7, kind: output, shape index: {0}]
  %s8 = inlined_call_operand.vmem [shape: f32[16,128], index: 8, kind: output, shape index: {1}]
  %9 = xla_tuple %s7, %s8
  %s10 = sld [smem:[#allocation0]]
  $region85: #{generator_forward.1} parent=0
    _
  %s12 = ssub.s32 1, %s10
  %s13 = scalar_select 0, %s12, %s10
  $region1: #{generator_forward.1} parent=0
    #allocation2 [shape = 'u8[8192]{0}', space=vmem, size = 0x2000, scoped, tag = 'input window, operand 0']
    #allocation3 [shape = 's32[2]{0}', space=sflag, size = 0x8, scoped, tag = 'scoped memory for generator_forward.1']
    #allocation4 [shape = 'u8[8192]{0}', space=vmem, size = 0x2000, scoped, tag = 'input window, operand 1, single buffered']
    #allocation5 [shape = 's32[1]{0}', space=sflag, size = 0x4, scoped, tag = 'scoped memory for generator_forward.1']
    #allocation6 [shape = 'u8[65536]{0}', space=vmem, size = 0x10000, scoped, tag = 'input window, operand 3, single buffered']
    #allocation7 [shape = 'u8[196608]{0}', space=vmem, size = 0x30000, scoped, tag = 'input window, operand 5, single buffered']
    #allocation8 [shape = 's32[1]{0}', space=sflag, size = 0x4, scoped, tag = 'scoped memory for generator_forward.1']
    %14 = vsyncpa [#allocation3], 0
    %s15 = scalar_lea.sflag [#allocation3], 1
    %16 = vsyncpa %s15, 0
    %17 = vsyncpa [#allocation5], 0
    %18 = vsyncpa [#allocation8], 0
    loop: start=0, step=1, limit=4
    $region2: #{generator_forward.1} parent=1 // loop_pre_header
      _
    $region3: #{generator_forward.1} parent=1 // loop_header
      %s20 = sphi 0, %s24
      %p21 = scmp.ge.s32.totalorder %s20, 4
      %s30 = sphi 0, %s32
      %s33 = sphi 0, %s30
      %s34 = sphi 0, %s33
      %s50 = sphi 0, %s34
      %s54 = sphi 0, %s54
      %s56 = sphi 0, %s54
      %s57 = sphi 0, %s56
      %s71 = sphi 0, %s57
      %s75 = sphi 0, %s75
      %s77 = sphi 0, %s75
      %s78 = sphi 0, %s77
      %s92 = sphi 0, %s78
      %s96 = sphi 0, %s96
      %s98 = sphi 0, %s96
      %s99 = sphi 0, %s98
      %s113 = sphi 0, %s99
      %s117 = sphi 0, %s117
      %s119 = sphi 0, %s117
      %s120 = sphi 0, %s119
      %s134 = sphi 0, %s120
      %s138 = sphi 0, %s138
      %s140 = sphi 0, %s138
      %s141 = sphi 0, %s140
      %s155 = sphi 0, %s141
      %s159 = sphi 0, %s159
      %s161 = sphi 0, %s159
      %s162 = sphi 0, %s161
      %s176 = sphi 0, %s162
      %s182 = sphi 0, %s184
      %s185 = sphi 0, %s182
      %s186 = sphi 0, %s185
      %s202 = sphi 0, %s186
      %s208 = sphi 0, %s210
      %s211 = sphi 0, %s208
      %s212 = sphi 0, %s211
      %s228 = sphi 0, %s212
    $region4: #{generator_forward.1} parent=1 // loop_header_branch
      %23 = sbr.rel (%p21) target = $region8
    $region5: #{generator_forward.1} parent=1 // loop_body
      %s25 = ssub.s32 %s20, 1
      %s26 = ssub.s32 %s20, 2
      %s27 = sadd.s32 %s20, 1
      %s28 = ssub.s32 %s20, %s27
      %p29 = scmp.eq.s32.totalorder %s28, 0
      %s31 = sadd.s32 %s30, 1
      %s32 = scalar_select %p29, %s30, %s31
      %p35 = pneg %p29
      %p36 = scmp.eq.s32.totalorder %s20, 1
      %p37 = por %p35, %p36
      %p38 = scmp.ne.s32.totalorder %s30, %s33
      %p39 = scmp.eq.s32.totalorder %s20, 0
      %p40 = por %p38, %p39
      %p41 = scmp.ne.s32.totalorder %s30, %s33
      %p42 = scmp.eq.s32.totalorder %s25, 1
      %p43 = por %p41, %p42
      %p44 = scmp.ne.s32.totalorder %s33, %s34
      %p45 = scmp.eq.s32.totalorder %s25, 0
      %p46 = por %p44, %p45
      %p47 = scmp.ne.s32.totalorder %s33, %s34
      %p48 = scmp.eq.s32.totalorder %s26, 1
      %p49 = por %p47, %p48
      %p51 = scmp.ne.s32.totalorder %s34, %s50
      %p52 = scmp.eq.s32.totalorder %s26, 0
      %p53 = por %p51, %p52
      %s55 = sadd.s32 %s54, 1
      %p58 = scmp.eq.s32.totalorder %s20, 1
      %p59 = scmp.ne.s32.totalorder %s54, %s56
      %p60 = scmp.eq.s32.totalorder %s20, 0
      %p61 = por %p59, %p60
      %p62 = scmp.ne.s32.totalorder %s54, %s56
      %p63 = scmp.eq.s32.totalorder %s25, 1
      %p64 = por %p62, %p63
      %p65 = scmp.ne.s32.totalorder %s56, %s57
      %p66 = scmp.eq.s32.totalorder %s25, 0
      %p67 = por %p65, %p66
      %p68 = scmp.ne.s32.totalorder %s56, %s57
      %p69 = scmp.eq.s32.totalorder %s26, 1
      %p70 = por %p68, %p69
      %p72 = scmp.ne.s32.totalorder %s57, %s71
      %p73 = scmp.eq.s32.totalorder %s26, 0
      %p74 = por %p72, %p73
      %s76 = sadd.s32 %s75, 1
      %p79 = scmp.eq.s32.totalorder %s20, 1
      %p80 = scmp.ne.s32.totalorder %s75, %s77
      %p81 = scmp.eq.s32.totalorder %s20, 0
      %p82 = por %p80, %p81
      %p83 = scmp.ne.s32.totalorder %s75, %s77
      %p84 = scmp.eq.s32.totalorder %s25, 1
      %p85 = por %p83, %p84
      %p86 = scmp.ne.s32.totalorder %s77, %s78
      %p87 = scmp.eq.s32.totalorder %s25, 0
      %p88 = por %p86, %p87
      %p89 = scmp.ne.s32.totalorder %s77, %s78
      %p90 = scmp.eq.s32.totalorder %s26, 1
      %p91 = por %p89, %p90
      %p93 = scmp.ne.s32.totalorder %s78, %s92
      %p94 = scmp.eq.s32.totalorder %s26, 0
      %p95 = por %p93, %p94
      %s97 = sadd.s32 %s96, 1
      %p100 = scmp.eq.s32.totalorder %s20, 1
      %p101 = scmp.ne.s32.totalorder %s96, %s98
      %p102 = scmp.eq.s32.totalorder %s20, 0
      %p103 = por %p101, %p102
      %p104 = scmp.ne.s32.totalorder %s96, %s98
      %p105 = scmp.eq.s32.totalorder %s25, 1
      %p106 = por %p104, %p105
      %p107 = scmp.ne.s32.totalorder %s98, %s99
      %p108 = scmp.eq.s32.totalorder %s25, 0
      %p109 = por %p107, %p108
      %p110 = scmp.ne.s32.totalorder %s98, %s99
      %p111 = scmp.eq.s32.totalorder %s26, 1
      %p112 = por %p110, %p111
      %p114 = scmp.ne.s32.totalorder %s99, %s113
      %p115 = scmp.eq.s32.totalorder %s26, 0
      %p116 = por %p114, %p115
      %s118 = sadd.s32 %s117, 1
      %p121 = scmp.eq.s32.totalorder %s20, 1
      %p122 = scmp.ne.s32.totalorder %s117, %s119
      %p123 = scmp.eq.s32.totalorder %s20, 0
      %p124 = por %p122, %p123
      %p125 = scmp.ne.s32.totalorder %s117, %s119
      %p126 = scmp.eq.s32.totalorder %s25, 1
      %p127 = por %p125, %p126
      %p128 = scmp.ne.s32.totalorder %s119, %s120
      %p129 = scmp.eq.s32.totalorder %s25, 0
      %p130 = por %p128, %p129
      %p131 = scmp.ne.s32.totalorder %s119, %s120
      %p132 = scmp.eq.s32.totalorder %s26, 1
      %p133 = por %p131, %p132
      %p135 = scmp.ne.s32.totalorder %s120, %s134
      %p136 = scmp.eq.s32.totalorder %s26, 0
      %p137 = por %p135, %p136
      %s139 = sadd.s32 %s138, 1
      %p142 = scmp.eq.s32.totalorder %s20, 1
      %p143 = scmp.ne.s32.totalorder %s138, %s140
      %p144 = scmp.eq.s32.totalorder %s20, 0
      %p145 = por %p143, %p144
      %p146 = scmp.ne.s32.totalorder %s138, %s140
      %p147 = scmp.eq.s32.totalorder %s25, 1
      %p148 = por %p146, %p147
      %p149 = scmp.ne.s32.totalorder %s140, %s141
      %p150 = scmp.eq.s32.totalorder %s25, 0
      %p151 = por %p149, %p150
      %p152 = scmp.ne.s32.totalorder %s140, %s141
      %p153 = scmp.eq.s32.totalorder %s26, 1
      %p154 = por %p152, %p153
      %p156 = scmp.ne.s32.totalorder %s141, %s155
      %p157 = scmp.eq.s32.totalorder %s26, 0
      %p158 = por %p156, %p157
      %s160 = sadd.s32 %s159, 1
      %p163 = scmp.eq.s32.totalorder %s20, 1
      %p164 = scmp.ne.s32.totalorder %s159, %s161
      %p165 = scmp.eq.s32.totalorder %s20, 0
      %p166 = por %p164, %p165
      %p167 = scmp.ne.s32.totalorder %s159, %s161
      %p168 = scmp.eq.s32.totalorder %s25, 1
      %p169 = por %p167, %p168
      %p170 = scmp.ne.s32.totalorder %s161, %s162
      %p171 = scmp.eq.s32.totalorder %s25, 0
      %p172 = por %p170, %p171
      %p173 = scmp.ne.s32.totalorder %s161, %s162
      %p174 = scmp.eq.s32.totalorder %s26, 1
      %p175 = por %p173, %p174
      %p177 = scmp.ne.s32.totalorder %s162, %s176
      %p178 = scmp.eq.s32.totalorder %s26, 0
      %p179 = por %p177, %p178
      %s180 = ssub.s32 %s20, %s27
      %p181 = scmp.eq.s32.totalorder %s180, 0
      %s183 = sadd.s32 %s182, 1
      %s184 = scalar_select %p181, %s182, %s183
      %p187 = pneg %p181
      %p188 = scmp.eq.s32.totalorder %s20, 1
      %p189 = por %p187, %p188
      %p190 = scmp.ne.s32.totalorder %s182, %s185
      %p191 = scmp.eq.s32.totalorder %s20, 0
      %p192 = por %p190, %p191
      %p193 = scmp.ne.s32.totalorder %s182, %s185
      %p194 = scmp.eq.s32.totalorder %s25, 1
      %p195 = por %p193, %p194
      %p196 = scmp.ne.s32.totalorder %s185, %s186
      %p197 = scmp.eq.s32.totalorder %s25, 0
      %p198 = por %p196, %p197
      %p199 = scmp.ne.s32.totalorder %s185, %s186
      %p200 = scmp.eq.s32.totalorder %s26, 1
      %p201 = por %p199, %p200
      %p203 = scmp.ne.s32.totalorder %s186, %s202
      %p204 = scmp.eq.s32.totalorder %s26, 0
      %p205 = por %p203, %p204
      %s206 = ssub.s32 %s20, %s27
      %p207 = scmp.eq.s32.totalorder %s206, 0
      %s209 = sadd.s32 %s208, 1
      %s210 = scalar_select %p207, %s208, %s209
      %p213 = pneg %p207
      %p214 = scmp.eq.s32.totalorder %s20, 1
      %p215 = por %p213, %p214
      %p216 = scmp.ne.s32.totalorder %s208, %s211
      %p217 = scmp.eq.s32.totalorder %s20, 0
      %p218 = por %p216, %p217
      %p219 = scmp.ne.s32.totalorder %s208, %s211
      %p220 = scmp.eq.s32.totalorder %s25, 1
      %p221 = por %p219, %p220
      %p222 = scmp.ne.s32.totalorder %s211, %s212
      %p223 = scmp.eq.s32.totalorder %s25, 0
      %p224 = por %p222, %p223
      %p225 = scmp.ne.s32.totalorder %s211, %s212
      %p226 = scmp.eq.s32.totalorder %s26, 1
      %p227 = por %p225, %p226
      %p229 = scmp.ne.s32.totalorder %s212, %s228
      %p230 = scmp.eq.s32.totalorder %s26, 0
      %p231 = por %p229, %p230
      %p232 = scmp.le.s32.totalorder 1, %s20
      %p233 = scmp.lt.s32.totalorder %s20, 3
      %p234 = pnand %p232, %p233
      %p235 = pneg %p234
      // Predicated region
      $region9: #{generator_forward.1} parent=5 // pred_check
        _
      $region10: #{generator_forward.1} parent=5 // pred_check_branch
        %237 = sbr.rel (%p234) target = $region12
      $region11: #{generator_forward.1} parent=5 // pred_region
        %s238 = ssub.s32 %s20, 1
        // Predicated region
        $region13: #{generator_forward.1} parent=11 // pred_check
          %p239 = pneg %p67
        $region14: #{generator_forward.1} parent=11 // pred_check_branch
          %241 = sbr.rel (%p239) target = $region16
        $region15: #{generator_forward.1} parent=11 // pred_region
          %s243 = ssub.s32 256, 256
          %244 = vsyncadd [#allocation5], %s243
          %s245 = sshll.u32 [#allocation4], 4
          %s246 = int_to_ptr.vmem [resolvable:$true] %s245
          %251 = dma.hbm_to_vmem [thread:$0]  %s1, 256, %s246, [#allocation5], 128, 128, 8
        $region16: #{generator_forward.1} parent=11 // pred_fallthru
          _
        // Predicated region
        $region17: #{generator_forward.1} parent=11 // pred_check
          %p252 = pneg %p88
        $region18: #{generator_forward.1} parent=11 // pred_check_branch
          %254 = sbr.rel (%p252) target = $region20
        $region19: #{generator_forward.1} parent=11 // pred_region
          _
        $region20: #{generator_forward.1} parent=11 // pred_fallthru
          _
        // Predicated region
        $region21: #{generator_forward.1} parent=11 // pred_check
          %p255 = pneg %p109
        $region22: #{generator_forward.1} parent=11 // pred_check_branch
          %257 = sbr.rel (%p255) target = $region24
        $region23: #{generator_forward.1} parent=11 // pred_region
          %s259 = ssub.s32 2048, 2048
          %260 = vsyncadd [#allocation5], %s259
          %s261 = sshll.u32 [#allocation6], 4
          %s262 = int_to_ptr.vmem [resolvable:$true] %s261
          %267 = dma.hbm_to_vmem [thread:$0]  %s3, 2048, %s262, [#allocation5], 128, 128, 8
        $region24: #{generator_forward.1} parent=11 // pred_fallthru
          _
        // Predicated region
        $region25: #{generator_forward.1} parent=11 // pred_check
          %p268 = pneg %p130
        $region26: #{generator_forward.1} parent=11 // pred_check_branch
          %270 = sbr.rel (%p268) target = $region28
        $region27: #{generator_forward.1} parent=11 // pred_region
          _
        $region28: #{generator_forward.1} parent=11 // pred_fallthru
          _
        // Predicated region
        $region29: #{generator_forward.1} parent=11 // pred_check
          %p271 = pneg %p151
        $region30: #{generator_forward.1} parent=11 // pred_check_branch
          %273 = sbr.rel (%p271) target = $region32
        $region31: #{generator_forward.1} parent=11 // pred_region
          %s275 = ssub.s32 6144, 6144
          %276 = vsyncadd [#allocation8], %s275
          %s277 = sshll.u32 [#allocation7], 4
          %s278 = int_to_ptr.vmem [resolvable:$true] %s277
          %283 = dma.hbm_to_vmem [thread:$0]  %s5, 6144, %s278, [#allocation8], 384, 384, 24
        $region32: #{generator_forward.1} parent=11 // pred_fallthru
          _
        // Predicated region
        $region33: #{generator_forward.1} parent=11 // pred_check
          %p284 = pneg %p172
        $region34: #{generator_forward.1} parent=11 // pred_check_branch
          %286 = sbr.rel (%p284) target = $region36
        $region35: #{generator_forward.1} parent=11 // pred_region
          _
        $region36: #{generator_forward.1} parent=11 // pred_fallthru
          _
      $region12: #{generator_forward.1} parent=5 // pred_fallthru
        _
      %p287 = scmp.lt.s32.totalorder %s20, 2
      // Predicated region
      $region37: #{generator_forward.1} parent=5 // pred_check
        %p288 = pneg %p287
      $region38: #{generator_forward.1} parent=5 // pred_check_branch
        %290 = sbr.rel (%p288) target = $region40
      $region39: #{generator_forward.1} parent=5 // pred_region
        // Predicated region
        $region41: #{generator_forward.1} parent=39 // pred_check
          %p291 = pneg %p40
        $region42: #{generator_forward.1} parent=39 // pred_check_branch
          %293 = sbr.rel (%p291) target = $region44
        $region43: #{generator_forward.1} parent=39 // pred_region
          %s294 = sand.u32 %s30, 1
          %s295 = scalar_lea.sflag [#allocation3], %s294
          %s296 = sand.u32 %s30, 1
          %s297 = smul.addr %s296, 8
          %s298 = scalar_lea.vmem [#allocation2], %s297
          %s300 = ssub.s32 128, 128
          %301 = vsyncadd %s295, %s300
          %s302 = smul.addr %s20, 128
          %s303 = scalar_lea.hbm %s0, %s302
          %s305 = sshll.u32 %s298, 4
          %s306 = int_to_ptr.vmem [resolvable:$true] %s305
          %308 = dma.hbm_to_vmem [thread:$0]  %s303, 128, %s306, %s295
        $region44: #{generator_forward.1} parent=39 // pred_fallthru
          _
      $region40: #{generator_forward.1} parent=5 // pred_fallthru
        _
      %p309 = scmp.le.s32.totalorder 1, %s20
      %p310 = scmp.lt.s32.totalorder %s20, 3
      %p311 = pnand %p309, %p310
      %p312 = pneg %p311
      // Predicated region
      $region45: #{generator_forward.1} parent=5 // pred_check
        _
      $region46: #{generator_forward.1} parent=5 // pred_check_branch
        %314 = sbr.rel (%p311) target = $region48
      $region47: #{generator_forward.1} parent=5 // pred_region
        %s315 = ssub.s32 %s20, 1
        %s316 = sand.u32 %s33, 1
        %s317 = scalar_lea.sflag [#allocation3], %s316
        %s318 = sand.u32 %s33, 1
        %s319 = smul.addr %s318, 8
        %s320 = scalar_lea.vmem [#allocation2], %s319
        // Predicated region
        $region49: #{generator_forward.1} parent=47 // pred_check
          %p321 = pneg %p46
        $region50: #{generator_forward.1} parent=47 // pred_check_branch
          %323 = sbr.rel (%p321) target = $region52
        $region51: #{generator_forward.1} parent=47 // pred_region
          %324 = dma.done %s317, 128
        $region52: #{generator_forward.1} parent=47 // pred_fallthru
          _
        // Predicated region
        $region53: #{generator_forward.1} parent=47 // pred_check
          %p325 = pneg %p67
        $region54: #{generator_forward.1} parent=47 // pred_check_branch
          %327 = sbr.rel (%p325) target = $region56
        $region55: #{generator_forward.1} parent=47 // pred_region
          %328 = dma.done [#allocation5], 256
        $region56: #{generator_forward.1} parent=47 // pred_fallthru
          _
        // Predicated region
        $region57: #{generator_forward.1} parent=47 // pred_check
          %p329 = pneg %p109
        $region58: #{generator_forward.1} parent=47 // pred_check_branch
          %331 = sbr.rel (%p329) target = $region60
        $region59: #{generator_forward.1} parent=47 // pred_region
          %332 = dma.done [#allocation5], 2048
        $region60: #{generator_forward.1} parent=47 // pred_fallthru
          _
        // Predicated region
        $region61: #{generator_forward.1} parent=47 // pred_check
          %p333 = pneg %p151
        $region62: #{generator_forward.1} parent=47 // pred_check_branch
          %335 = sbr.rel (%p333) target = $region64
        $region63: #{generator_forward.1} parent=47 // pred_region
          %336 = dma.done [#allocation8], 6144
        $region64: #{generator_forward.1} parent=47 // pred_fallthru
          _
        %s337 = sand.u32 %s33, 1
        %s338 = scalar_lea.sflag [#allocation3], %s337
        %s339 = sand.u32 %s33, 1
        %s340 = smul.addr %s339, 8
        %s341 = scalar_lea.vmem [#allocation2], %s340
        %p342 = pneg %p46
        %p343 = pneg %p43
        %p344 = pneg %p67
        %p345 = pneg %p64
        %p346 = pneg %p88
        %p347 = pneg %p85
        %p348 = pneg %p109
        %p349 = pneg %p106
        %p350 = pneg %p130
        %p351 = pneg %p127
        %p352 = pneg %p151
        %p353 = pneg %p148
        %p354 = pneg %p172
        %p355 = pneg %p169
        %p356 = pneg %p198
        %p357 = pneg %p195
        %p358 = scmp.lt.s32.totalorder %s25, 1
        %s359 = scalar_select %p358, %s25, 1
        %s360 = smul.addr %s359, 2
        %s361 = smul.addr %s360, 8
        %s362 = scalar_lea.vmem %s7, %s361
        %p363 = pneg %p224
        %p364 = pneg %p221
        %p365 = scmp.lt.s32.totalorder %s25, 1
        %s366 = scalar_select %p365, %s25, 1
        %s367 = smul.addr %s366, 8
        %s368 = scalar_lea.vmem %s8, %s367
        %p369 = scmp.lt.s32.totalorder %s25, 1
        %s370 = scalar_select %p369, %s25, 1
        %s371 = smul.addr %s370, 2
        %s372 = smul.addr %s371, 8
        %s373 = scalar_lea.vmem %s7, %s372
        %p374 = scmp.lt.s32.totalorder %s25, 1
        %s375 = scalar_select %p374, %s25, 1
        %s376 = smul.addr %s375, 8
        %s377 = scalar_lea.vmem %s8, %s376
        %v378 = vld [vmem:[%s320] sm:$0xff]
        %v379 = vld [vmem:[#allocation4] sm:$0xff]
        %v380 = vld [vmem:[#allocation4 + $0x8] sm:$0xff]
        %v381 = vld [vmem:[%s2] sm:$0x1]
        %v383 = vlaneseq
        %v384 = vshrl.u32 %v383, 7
        %v385 = vsub.s32 0, %v384
        %v386 = vrot.slane %v381, %v385
        %vm388 = vcmask 130048
        %v390 = vsel %vm388, %v378, 0
        %392 = vmatprep.subr.mxu0 0.0
        %393 = vmatpush1.msra.mxu0 %v379
        %394 = vmatprep.subr.mxu0 0.0
        %395 = vmatpush1.msra.mxu0 %v380
        %396 = vmatprep.subr.mxu0 0.0
        %397 = vmatpush1.msra.mxu0 0.0
        %398 = vmatprep.subr.mxu0 0.0
        %399 = vmatpush1.msra.mxu0 0.0
        %400 = vmatprep.subr.mxu0 0.0
        %401 = vmatpush1.msra.mxu0 0.0
        %402 = vmatprep.subr.mxu0 0.0
        %403 = vmatpush1.msra.mxu0 0.0
        %404 = vmatprep.subr.mxu0 0.0
        %405 = vmatpush1.msra.mxu0 0.0
        %406 = vmatprep.subr.mxu0 0.0
        %407 = vmatpush1.msra.mxu0 0.0
        %408 = vmatprep.subr.mxu0 0.0
        %409 = vmatpush1.msra.mxu0 0.0
        %410 = vmatprep.subr.mxu0 0.0
        %411 = vmatpush1.msra.mxu0 0.0
        %412 = vmatprep.subr.mxu0 0.0
        %413 = vmatpush1.msra.mxu0 0.0
        %414 = vmatprep.subr.mxu0 0.0
        %415 = vmatpush1.msra.mxu0 0.0
        %416 = vmatprep.subr.mxu0 0.0
        %417 = vmatpush1.msra.mxu0 0.0
        %418 = vmatprep.subr.mxu0 0.0
        %419 = vmatpush1.msra.mxu0 0.0
        %420 = vmatprep.subr.mxu0 0.0
        %421 = vmatpush1.msra.mxu0 0.0
        %422 = vmatprep.subr.mxu0 0.0
        %423 = vmatpush1.msra.mxu0 0.0
        %424 = vmatprep.subr.mxu0 0.0
        %425 = vmatpush1.msra.mxu0 0.0
        %426 = vmatprep.subr.mxu0 0.0
        %427 = vmatpush1.msra.mxu0 0.0
        %428 = vmatprep.subr.mxu0 0.0
        %429 = vmatpush1.msra.mxu0 0.0
        %430 = vmatprep.subr.mxu0 0.0
        %431 = vmatpush1.msra.mxu0 0.0
        %432 = vmatprep.subr.mxu0 0.0
        %433 = vmatpush1.msra.mxu0 0.0
        %434 = vmatprep.subr.mxu0 0.0
        %435 = vmatpush1.msra.mxu0 0.0
        %436 = vmatprep.subr.mxu0 0.0
        %437 = vmatpush1.msra.mxu0 0.0
        %438 = vmatprep.subr.mxu0 0.0
        %439 = vmatpush1.msra.mxu0 0.0
        %440 = vmatprep.subr.mxu0 0.0
        %441 = vmatpush1.msra.mxu0 0.0
        %442 = vmatprep.subr.mxu0 0.0
        %443 = vmatpush1.msra.mxu0 0.0
        %444 = vmatprep.subr.mxu0 0.0
        %445 = vmatpush1.msra.mxu0 0.0
        %446 = vmatprep.subr.mxu0 0.0
        %447 = vmatpush1.msra.mxu0 0.0
        %448 = vmatprep.subr.mxu0 0.0
        %449 = vmatpush1.msra.mxu0 0.0
        %450 = vmatprep.subr.mxu0 0.0
        %451 = vmatpush1.msra.mxu0 0.0
        %452 = vmatprep.subr.mxu0 0.0
        %453 = vmatpush1.msra.mxu0 0.0
        %454 = vmatprep.subr.mxu0 0.0
        %455 = vmatpush1.msra.mxu0 0.0
        %456 = vmatprep.mubr.f32.mxu0 0.0
        %457 = vmatmul.mubr.f32.gmra.mrb[0].mxu0 %v390
        %v458 = vpop.f32.mrb[0].mxu0
        %v459 = vadd.f32 %v386, %v458
        %v460 = vpop.f32.mrb[0].mxu0
        %461 = vdwg.mxu0
        %v462 = vtanh.pop %v459
        %v463 = vld [vmem:[#allocation6] sm:$0xff]
        %v464 = vld [vmem:[#allocation6 + $0x8] sm:$0xff]
        %v465 = vld [vmem:[#allocation6 + $0x10] sm:$0xff]
        %v466 = vld [vmem:[#allocation6 + $0x18] sm:$0xff]
        %v467 = vld [vmem:[#allocation6 + $0x20] sm:$0xff]
        %v468 = vld [vmem:[#allocation6 + $0x28] sm:$0xff]
        %v469 = vld [vmem:[#allocation6 + $0x30] sm:$0xff]
        %v470 = vld [vmem:[#allocation6 + $0x38] sm:$0xff]
        %v471 = vld [vmem:[#allocation6 + $0x40] sm:$0xff]
        %v472 = vld [vmem:[#allocation6 + $0x48] sm:$0xff]
        %v473 = vld [vmem:[#allocation6 + $0x50] sm:$0xff]
        %v474 = vld [vmem:[#allocation6 + $0x58] sm:$0xff]
        %v475 = vld [vmem:[#allocation6 + $0x60] sm:$0xff]
        %v476 = vld [vmem:[#allocation6 + $0x68] sm:$0xff]
        %v477 = vld [vmem:[#allocation6 + $0x70] sm:$0xff]
        %v478 = vld [vmem:[#allocation6 + $0x78] sm:$0xff]
        %v479 = vld [vmem:[%s4] sm:$0x1]
        %v481 = vlaneseq
        %v482 = vshrl.u32 %v481, 7
        %v483 = vsub.s32 0, %v482
        %v484 = vrot.slane %v479, %v483
        %486 = vmatprep.subr.mxu0 0.0
        %487 = vmatpush1.msra.mxu0 %v463
        %488 = vmatprep.subr.mxu0 0.0
        %489 = vmatpush1.msra.mxu0 %v464
        %490 = vmatprep.subr.mxu0 0.0
        %491 = vmatpush1.msra.mxu0 %v465
        %492 = vmatprep.subr.mxu0 0.0
        %493 = vmatpush1.msra.mxu0 %v466
        %494 = vmatprep.subr.mxu0 0.0
        %495 = vmatpush1.msra.mxu0 %v467
        %496 = vmatprep.subr.mxu0 0.0
        %497 = vmatpush1.msra.mxu0 %v468
        %498 = vmatprep.subr.mxu0 0.0
        %499 = vmatpush1.msra.mxu0 %v469
        %500 = vmatprep.subr.mxu0 0.0
        %501 = vmatpush1.msra.mxu0 %v470
        %502 = vmatprep.subr.mxu0 0.0
        %503 = vmatpush1.msra.mxu0 %v471
        %504 = vmatprep.subr.mxu0 0.0
        %505 = vmatpush1.msra.mxu0 %v472
        %506 = vmatprep.subr.mxu0 0.0
        %507 = vmatpush1.msra.mxu0 %v473
        %508 = vmatprep.subr.mxu0 0.0
        %509 = vmatpush1.msra.mxu0 %v474
        %510 = vmatprep.subr.mxu0 0.0
        %511 = vmatpush1.msra.mxu0 %v475
        %512 = vmatprep.subr.mxu0 0.0
        %513 = vmatpush1.msra.mxu0 %v476
        %514 = vmatprep.subr.mxu0 0.0
        %515 = vmatpush1.msra.mxu0 %v477
        %516 = vmatprep.subr.mxu0 0.0
        %517 = vmatpush1.msra.mxu0 %v478
        %518 = vmatprep.subr.mxu0 0.0
        %519 = vmatpush1.msra.mxu0 0.0
        %520 = vmatprep.subr.mxu0 0.0
        %521 = vmatpush1.msra.mxu0 0.0
        %522 = vmatprep.subr.mxu0 0.0
        %523 = vmatpush1.msra.mxu0 0.0
        %524 = vmatprep.subr.mxu0 0.0
        %525 = vmatpush1.msra.mxu0 0.0
        %526 = vmatprep.subr.mxu0 0.0
        %527 = vmatpush1.msra.mxu0 0.0
        %528 = vmatprep.subr.mxu0 0.0
        %529 = vmatpush1.msra.mxu0 0.0
        %530 = vmatprep.subr.mxu0 0.0
        %531 = vmatpush1.msra.mxu0 0.0
        %532 = vmatprep.subr.mxu0 0.0
        %533 = vmatpush1.msra.mxu0 0.0
        %534 = vmatprep.subr.mxu0 0.0
        %535 = vmatpush1.msra.mxu0 0.0
        %536 = vmatprep.subr.mxu0 0.0
        %537 = vmatpush1.msra.mxu0 0.0
        %538 = vmatprep.subr.mxu0 0.0
        %539 = vmatpush1.msra.mxu0 0.0
        %540 = vmatprep.subr.mxu0 0.0
        %541 = vmatpush1.msra.mxu0 0.0
        %542 = vmatprep.subr.mxu0 0.0
        %543 = vmatpush1.msra.mxu0 0.0
        %544 = vmatprep.subr.mxu0 0.0
        %545 = vmatpush1.msra.mxu0 0.0
        %546 = vmatprep.subr.mxu0 0.0
        %547 = vmatpush1.msra.mxu0 0.0
        %548 = vmatprep.subr.mxu0 0.0
        %549 = vmatpush1.msra.mxu0 0.0
        %550 = vmatprep.mubr.f32.mxu0 0.0
        %551 = vmatmul.mubr.f32.gmra.mrb[0].mxu0 %v462
        %v552 = vpop.f32.mrb[0].mxu0
        %v553 = vadd.f32 %v484, %v552
        %v554 = vpop.f32.mrb[0].mxu0
        %555 = vdwg.mxu0
        %v556 = vtanh.pop %v553
        %v557 = vld [vmem:[#allocation7] sm:$0xff]
        %v558 = vld [vmem:[#allocation7 + $0x8] sm:$0xff]
        %v559 = vld [vmem:[#allocation7 + $0x10] sm:$0xff]
        %v560 = vld [vmem:[#allocation7 + $0x18] sm:$0xff]
        %v561 = vld [vmem:[#allocation7 + $0x20] sm:$0xff]
        %v562 = vld [vmem:[#allocation7 + $0x28] sm:$0xff]
        %v563 = vld [vmem:[#allocation7 + $0x30] sm:$0xff]
        %v564 = vld [vmem:[#allocation7 + $0x38] sm:$0xff]
        %v565 = vld [vmem:[#allocation7 + $0x40] sm:$0xff]
        %v566 = vld [vmem:[#allocation7 + $0x48] sm:$0xff]
        %v567 = vld [vmem:[#allocation7 + $0x50] sm:$0xff]
        %v568 = vld [vmem:[#allocation7 + $0x58] sm:$0xff]
        %v569 = vld [vmem:[#allocation7 + $0x60] sm:$0xff]
        %v570 = vld [vmem:[#allocation7 + $0x68] sm:$0xff]
        %v571 = vld [vmem:[#allocation7 + $0x70] sm:$0xff]
        %v572 = vld [vmem:[#allocation7 + $0x78] sm:$0xff]
        %v573 = vld [vmem:[#allocation7 + $0x80] sm:$0xff]
        %v574 = vld [vmem:[#allocation7 + $0x88] sm:$0xff]
        %v575 = vld [vmem:[#allocation7 + $0x90] sm:$0xff]
        %v576 = vld [vmem:[#allocation7 + $0x98] sm:$0xff]
        %v577 = vld [vmem:[#allocation7 + $0xa0] sm:$0xff]
        %v578 = vld [vmem:[#allocation7 + $0xa8] sm:$0xff]
        %v579 = vld [vmem:[#allocation7 + $0xb0] sm:$0xff]
        %v580 = vld [vmem:[#allocation7 + $0xb8] sm:$0xff]
        %v581 = vld [vmem:[#allocation7 + $0xc0] sm:$0xff]
        %v582 = vld [vmem:[#allocation7 + $0xc8] sm:$0xff]
        %v583 = vld [vmem:[#allocation7 + $0xd0] sm:$0xff]
        %v584 = vld [vmem:[#allocation7 + $0xd8] sm:$0xff]
        %v585 = vld [vmem:[#allocation7 + $0xe0] sm:$0xff]
        %v586 = vld [vmem:[#allocation7 + $0xe8] sm:$0xff]
        %v587 = vld [vmem:[#allocation7 + $0xf0] sm:$0xff]
        %v588 = vld [vmem:[#allocation7 + $0xf8] sm:$0xff]
        %v589 = vld [vmem:[#allocation7 + $0x100] sm:$0xff]
        %v590 = vld [vmem:[#allocation7 + $0x108] sm:$0xff]
        %v591 = vld [vmem:[#allocation7 + $0x110] sm:$0xff]
        %v592 = vld [vmem:[#allocation7 + $0x118] sm:$0xff]
        %v593 = vld [vmem:[#allocation7 + $0x120] sm:$0xff]
        %v594 = vld [vmem:[#allocation7 + $0x128] sm:$0xff]
        %v595 = vld [vmem:[#allocation7 + $0x130] sm:$0xff]
        %v596 = vld [vmem:[#allocation7 + $0x138] sm:$0xff]
        %v597 = vld [vmem:[#allocation7 + $0x140] sm:$0xff]
        %v598 = vld [vmem:[#allocation7 + $0x148] sm:$0xff]
        %v599 = vld [vmem:[#allocation7 + $0x150] sm:$0xff]
        %v600 = vld [vmem:[#allocation7 + $0x158] sm:$0xff]
        %v601 = vld [vmem:[#allocation7 + $0x160] sm:$0xff]
        %v602 = vld [vmem:[#allocation7 + $0x168] sm:$0xff]
        %v603 = vld [vmem:[#allocation7 + $0x170] sm:$0xff]
        %v604 = vld [vmem:[#allocation7 + $0x178] sm:$0xff]
        %v605 = vld [vmem:[%s6] sm:$0x7]
        %v607 = vlaneseq
        %v608 = vshrl.u32 %v607, 7
        %v609 = vsub.s32 0, %v608
        %v610 = vrot.slane %v605, %v609
        %v611 = vlaneseq
        %v612 = vshrl.u32 %v611, 7
        %v613 = vsub.s32 1, %v612
        %v614 = vrot.slane %v605, %v613
        %v615 = vlaneseq
        %v616 = vshrl.u32 %v615, 7
        %v617 = vsub.s32 2, %v616
        %v618 = vrot.slane %v605, %v617
        %622 = vmatprep.subr.mxu0 %v558
        %623 = vmatpush1.msra.mxu0 %v557
        %624 = vmatprep.subr.mxu0 %v561
        %625 = vmatpush1.msra.mxu0 %v560
        %626 = vmatprep.subr.mxu0 %v564
        %627 = vmatpush1.msra.mxu0 %v563
        %628 = vmatprep.subr.mxu0 %v567
        %629 = vmatpush1.msra.mxu0 %v566
        %630 = vmatprep.subr.mxu0 %v570
        %631 = vmatpush1.msra.mxu0 %v569
        %632 = vmatprep.subr.mxu0 %v573
        %633 = vmatpush1.msra.mxu0 %v572
        %634 = vmatprep.subr.mxu0 %v576
        %635 = vmatpush1.msra.mxu0 %v575
        %636 = vmatprep.subr.mxu0 %v579
        %637 = vmatpush1.msra.mxu0 %v578
        %638 = vmatprep.subr.mxu0 %v582
        %639 = vmatpush1.msra.mxu0 %v581
        %640 = vmatprep.subr.mxu0 %v585
        %641 = vmatpush1.msra.mxu0 %v584
        %642 = vmatprep.subr.mxu0 %v588
        %643 = vmatpush1.msra.mxu0 %v587
        %644 = vmatprep.subr.mxu0 %v591
        %645 = vmatpush1.msra.mxu0 %v590
        %646 = vmatprep.subr.mxu0 %v594
        %647 = vmatpush1.msra.mxu0 %v593
        %648 = vmatprep.subr.mxu0 %v597
        %649 = vmatpush1.msra.mxu0 %v596
        %650 = vmatprep.subr.mxu0 %v600
        %651 = vmatpush1.msra.mxu0 %v599
        %652 = vmatprep.subr.mxu0 %v603
        %653 = vmatpush1.msra.mxu0 %v602
        %654 = vmatprep.subr.mxu0 0.0
        %655 = vmatpush1.msra.mxu0 0.0
        %656 = vmatprep.subr.mxu0 0.0
        %657 = vmatpush1.msra.mxu0 0.0
        %658 = vmatprep.subr.mxu0 0.0
        %659 = vmatpush1.msra.mxu0 0.0
        %660 = vmatprep.subr.mxu0 0.0
        %661 = vmatpush1.msra.mxu0 0.0
        %662 = vmatprep.subr.mxu0 0.0
        %663 = vmatpush1.msra.mxu0 0.0
        %664 = vmatprep.subr.mxu0 0.0
        %665 = vmatpush1.msra.mxu0 0.0
        %666 = vmatprep.subr.mxu0 0.0
        %667 = vmatpush1.msra.mxu0 0.0
        %668 = vmatprep.subr.mxu0 0.0
        %669 = vmatpush1.msra.mxu0 0.0
        %670 = vmatprep.subr.mxu0 0.0
        %671 = vmatpush1.msra.mxu0 0.0
        %672 = vmatprep.subr.mxu0 0.0
        %673 = vmatpush1.msra.mxu0 0.0
        %674 = vmatprep.subr.mxu0 0.0
        %675 = vmatpush1.msra.mxu0 0.0
        %676 = vmatprep.subr.mxu0 0.0
        %677 = vmatpush1.msra.mxu0 0.0
        %678 = vmatprep.subr.mxu0 0.0
        %679 = vmatpush1.msra.mxu0 0.0
        %680 = vmatprep.subr.mxu0 0.0
        %681 = vmatpush1.msra.mxu0 0.0
        %682 = vmatprep.subr.mxu0 0.0
        %683 = vmatpush1.msra.mxu0 0.0
        %684 = vmatprep.subr.mxu0 0.0
        %685 = vmatpush1.msra.mxu0 0.0
        %686 = vmatprep.mubr.f32.mxu0 0.0
        %687 = vmatmul.mubr.f32.gmra.mrb[0].mxu0 %v556
        %v688 = vpop.f32.mrb[0].mxu0
        %v689 = vadd.f32 %v610, %v688
        %v690 = vpop.f32.mrb[0].mxu0
        %v691 = vadd.f32 %v614, %v690
        %692 = vdwg.mxu0
        %693 = vmatprep.subr.mxu0 0.0
        %694 = vmatpush1.msra.mxu0 %v559
        %695 = vmatprep.subr.mxu0 0.0
        %696 = vmatpush1.msra.mxu0 %v562
        %697 = vmatprep.subr.mxu0 0.0
        %698 = vmatpush1.msra.mxu0 %v565
        %699 = vmatprep.subr.mxu0 0.0
        %700 = vmatpush1.msra.mxu0 %v568
        %701 = vmatprep.subr.mxu0 0.0
        %702 = vmatpush1.msra.mxu0 %v571
        %703 = vmatprep.subr.mxu0 0.0
        %704 = vmatpush1.msra.mxu0 %v574
        %705 = vmatprep.subr.mxu0 0.0
        %706 = vmatpush1.msra.mxu0 %v577
        %707 = vmatprep.subr.mxu0 0.0
        %708 = vmatpush1.msra.mxu0 %v580
        %709 = vmatprep.subr.mxu0 0.0
        %710 = vmatpush1.msra.mxu0 %v583
        %711 = vmatprep.subr.mxu0 0.0
        %712 = vmatpush1.msra.mxu0 %v586
        %713 = vmatprep.subr.mxu0 0.0
        %714 = vmatpush1.msra.mxu0 %v589
        %715 = vmatprep.subr.mxu0 0.0
        %716 = vmatpush1.msra.mxu0 %v592
        %717 = vmatprep.subr.mxu0 0.0
        %718 = vmatpush1.msra.mxu0 %v595
        %719 = vmatprep.subr.mxu0 0.0
        %720 = vmatpush1.msra.mxu0 %v598
        %721 = vmatprep.subr.mxu0 0.0
        %722 = vmatpush1.msra.mxu0 %v601
        %723 = vmatprep.subr.mxu0 0.0
        %724 = vmatpush1.msra.mxu0 %v604
        %725 = vmatprep.subr.mxu0 0.0
        %726 = vmatpush1.msra.mxu0 0.0
        %727 = vmatprep.subr.mxu0 0.0
        %728 = vmatpush1.msra.mxu0 0.0
        %729 = vmatprep.subr.mxu0 0.0
        %730 = vmatpush1.msra.mxu0 0.0
        %731 = vmatprep.subr.mxu0 0.0
        %732 = vmatpush1.msra.mxu0 0.0
        %733 = vmatprep.subr.mxu0 0.0
        %734 = vmatpush1.msra.mxu0 0.0
        %735 = vmatprep.subr.mxu0 0.0
        %736 = vmatpush1.msra.mxu0 0.0
        %737 = vmatprep.subr.mxu0 0.0
        %738 = vmatpush1.msra.mxu0 0.0
        %739 = vmatprep.subr.mxu0 0.0
        %740 = vmatpush1.msra.mxu0 0.0
        %741 = vmatprep.subr.mxu0 0.0
        %742 = vmatpush1.msra.mxu0 0.0
        %743 = vmatprep.subr.mxu0 0.0
        %744 = vmatpush1.msra.mxu0 0.0
        %745 = vmatprep.subr.mxu0 0.0
        %746 = vmatpush1.msra.mxu0 0.0
        %747 = vmatprep.subr.mxu0 0.0
        %748 = vmatpush1.msra.mxu0 0.0
        %749 = vmatprep.subr.mxu0 0.0
        %750 = vmatpush1.msra.mxu0 0.0
        %751 = vmatprep.subr.mxu0 0.0
        %752 = vmatpush1.msra.mxu0 0.0
        %753 = vmatprep.subr.mxu0 0.0
        %754 = vmatpush1.msra.mxu0 0.0
        %755 = vmatprep.subr.mxu0 0.0
        %756 = vmatpush1.msra.mxu0 0.0
        %757 = vmatprep.mubr.f32.mxu0 0.0
        %758 = vmatmul.mubr.f32.gmra.mrb[0].mxu0 %v556
        %v759 = vpop.f32.mrb[0].mxu0
        %v760 = vadd.f32 %v618, %v759
        %v761 = vpop.f32.mrb[0].mxu0
        %762 = vdwg.mxu0
        %763 = vst [vmem:[%s373] sm:$0xff] %v689
        %764 = vst [vmem:[%s373 + $0x8] sm:$0xff] %v691
        %765 = vst [vmem:[%s377] sm:$0xff] %v760
        %p766 = scmp.lt.s32.totalorder %s25, 1
        %s767 = scalar_select %p766, %s25, 1
        %s768 = smul.addr %s767, 2
        %s769 = smul.addr %s768, 8
        %s770 = scalar_lea.vmem %s7, %s769
        %p771 = scmp.lt.s32.totalorder %s25, 1
        %s772 = scalar_select %p771, %s25, 1
        %s773 = smul.addr %s772, 8
        %s774 = scalar_lea.vmem %s8, %s773
        // Predicated region
        $region65: #{generator_forward.1} parent=47 // pred_check
          %p775 = pneg %p195
        $region66: #{generator_forward.1} parent=47 // pred_check_branch
          %777 = sbr.rel (%p775) target = $region68
        $region67: #{generator_forward.1} parent=47 // pred_region
          _
        $region68: #{generator_forward.1} parent=47 // pred_fallthru
          _
        // Predicated region
        $region69: #{generator_forward.1} parent=47 // pred_check
          %p778 = pneg %p221
        $region70: #{generator_forward.1} parent=47 // pred_check_branch
          %780 = sbr.rel (%p778) target = $region72
        $region71: #{generator_forward.1} parent=47 // pred_region
          _
        $region72: #{generator_forward.1} parent=47 // pred_fallthru
          _
      $region48: #{generator_forward.1} parent=5 // pred_fallthru
        _
      %p781 = scmp.le.s32.totalorder 2, %s20
      // Predicated region
      $region73: #{generator_forward.1} parent=5 // pred_check
        %p782 = pneg %p781
      $region74: #{generator_forward.1} parent=5 // pred_check_branch
        %784 = sbr.rel (%p782) target = $region76
      $region75: #{generator_forward.1} parent=5 // pred_region
        %s785 = ssub.s32 %s20, 2
        // Predicated region
        $region77: #{generator_forward.1} parent=75 // pred_check
          %p786 = pneg %p201
        $region78: #{generator_forward.1} parent=75 // pred_check_branch
          %788 = sbr.rel (%p786) target = $region80
        $region79: #{generator_forward.1} parent=75 // pred_region
          %p789 = scmp.lt.s32.totalorder %s26, 1
          %s790 = scalar_select %p789, %s26, 1
          %s791 = smul.addr %s790, 2
          %s792 = smul.addr %s791, 8
          %s793 = scalar_lea.vmem %s7, %s792
        $region80: #{generator_forward.1} parent=75 // pred_fallthru
          _
        // Predicated region
        $region81: #{generator_forward.1} parent=75 // pred_check
          %p794 = pneg %p227
        $region82: #{generator_forward.1} parent=75 // pred_check_branch
          %796 = sbr.rel (%p794) target = $region84
        $region83: #{generator_forward.1} parent=75 // pred_region
          %p797 = scmp.lt.s32.totalorder %s26, 1
          %s798 = scalar_select %p797, %s26, 1
          %s799 = smul.addr %s798, 8
          %s800 = scalar_lea.vmem %s8, %s799
        $region84: #{generator_forward.1} parent=75 // pred_fallthru
          _
      $region76: #{generator_forward.1} parent=5 // pred_fallthru
        _
    $region6: #{generator_forward.1} parent=1 // loop_footer
      %s24 = sadd.s32 1, %s20
    $region7: #{generator_forward.1} parent=1 // loop_footer_branch
      %19 = sbr.rel target = $region3
    $region8: #{generator_forward.1} parent=1 // loop_exit
      _
    %801 = vsyncpa [#allocation3], 1
    %s802 = scalar_lea.sflag [#allocation3], 1
    %803 = vsyncpa %s802, 1
    %804 = vsyncpa [#allocation5], 1
    %805 = vsyncpa [#allocation8], 1

</llo_original>
